<compile_context>
chip_gen: v6e
topology: v6e:2x2x1
jax: 0.10.0
libtpu: 0.0.40
codegen_flags: <defaults>
</compile_context>

<pallas_src>
import functools

import jax
import jax.numpy as jnp
from jax.experimental import pallas as pl
from jax.experimental.pallas import tpu as pltpu

_LANE = 128


# ---------------------------------------------------------------------------
# Kernels.  Every kernel sees a lane-dense (T, LN) x-view plus (1, LN)
# stat/param rows, regardless of which wrapper layout (direct or packed)
# produced it.
# ---------------------------------------------------------------------------

def _norm_kernel(x_ref, w_ref, b_ref, y_ref, mean_ref, std_ref, *, eps, affine, inv_t):
    x = x_ref[...].astype(jnp.float32)                          # (T, LN)
    # single-pass statistics
    s1 = jnp.sum(x, axis=0, keepdims=True)                      # (1, LN)
    s2 = jnp.sum(x * x, axis=0, keepdims=True)                  # (1, LN)
    mean = s1 * inv_t
    var = jnp.maximum(s2 * inv_t - mean * mean, 0.0)            # guard cancellation
    std = jnp.sqrt(var + eps)                                   # stored stat (exact)
    inv_std = jax.lax.rsqrt(var + eps)
    # fold normalization + affine into one scale/shift on the stat row
    scale = inv_std * w_ref[...] if affine else inv_std
    shift = (b_ref[...] if affine else 0.0) - mean * scale
    y_ref[...] = (x * scale + shift).astype(y_ref.dtype)
    mean_ref[...] = mean
    std_ref[...] = std


def _norm_masked_kernel(x_ref, m_ref, w_ref, b_ref, y_ref, mean_ref, std_ref,
                        *, eps, affine):
    x = x_ref[...].astype(jnp.float32)                          # (T, LN)
    mf = (m_ref[...] != 0).astype(jnp.float32)                  # binary mask -> {0,1}
    cnt = jnp.sum(mf, axis=0, keepdims=True) + eps               # (1, LN)
    inv_cnt = pl.reciprocal(cnt, approx=False)
    mean = jnp.sum(x, axis=0, keepdims=True) * inv_cnt           # torch sums raw x
    x_enc = x * mf                                               # == masked_fill(mask==0, 0)
    variance = jnp.sum(x_enc * x_enc, axis=0, keepdims=True) + eps
    ratio = variance * inv_cnt
    std = jnp.sqrt(ratio)                                        # stored stat (exact)
    inv_std = jax.lax.rsqrt(ratio)
    scale = inv_std * w_ref[...] if affine else inv_std
    shift = (b_ref[...] if affine else 0.0) - mean * scale
    y_ref[...] = (x * scale + shift).astype(y_ref.dtype)
    mean_ref[...] = mean
    std_ref[...] = std


def _denorm_kernel(x_ref, mean_ref, std_ref, w_ref, b_ref, y_ref, *, eps, affine):
    x = x_ref[...].astype(jnp.float32)                           # (T, LN)
    std = std_ref[...]
    mean = mean_ref[...]
    if affine:
        # torch: ((x - b) / (w + eps)) * std + mean  ==  x*scale + shift
        scale = std * pl.reciprocal(w_ref[...] + eps, approx=False)
        shift = mean - b_ref[...] * scale
    else:
        scale = std
        shift = mean
    y_ref[...] = (x * scale + shift).astype(y_ref.dtype)


# ---------------------------------------------------------------------------
# Hardware-aware tiling / VMEM helpers
# ---------------------------------------------------------------------------

def _round_up(n, m):
    return ((n + m - 1) // m) * m


def _hw_params():
    """(vmem_capacity_bytes, target_block_bytes), generation-aware."""
    try:
        cap = int(pltpu.get_tpu_info().vmem_capacity_bytes)
    except Exception:
        cap = 64 << 20                      # conservative (v7x-sized) fallback
    target = (8 << 20) if cap >= (100 << 20) else (2 << 20)
    return cap, target


def _vmem_limit(need_bytes, cap_bytes):
    ceiling = (cap_bytes * 3) // 4          # leave headroom for Mosaic temps/scratch
    return int(min(max(need_bytes + (2 << 20), 16 << 20), ceiling))


def _pick_tile(n, T, itemsize, target_block_bytes, min_steps):
    """Largest multiple-of-128 divisor of n whose (T, tile) block fits the byte
    budget, preferring >= min_steps grid steps along this axis.  Non-multiple-
    of-128 n is returned whole (full-dim block)."""
    if n % _LANE != 0:
        return n
    divs = [_LANE * m for m in range(n // _LANE, 0, -1) if n % (_LANE * m) == 0]
    for req in (min_steps, 1):
        for tile in divs:
            if (n // tile) >= req and T * tile * itemsize <= target_block_bytes:
                return tile
    return _LANE


def _use_direct(B, T, F, itemsize, target_block_bytes):
    """Run directly on (B, T, F) when the feature axis is lane-friendly."""
    if F % _LANE == 0:
        return True
    return F >= _LANE and T * F * max(itemsize, 4) <= target_block_bytes


# ---------------------------------------------------------------------------
# Packed-layout helpers (small-F fallback only)
# ---------------------------------------------------------------------------

def _pack(x):
    """(B, T, F) -> (T, B*F) lane-dense slab (b-major, f-minor in lanes)."""
    B, T, F = x.shape
    return jnp.transpose(x, (1, 0, 2)).reshape(T, B * F)


def _unpack(y, B, T, F):
    return jnp.transpose(y[:, : B * F].reshape(T, B, F), (1, 0, 2))


def _pad_lanes(a, n_pad, value=0):
    n = a.shape[-1]
    if n == n_pad:
        return a
    pad = ((0, 0),) * (a.ndim - 1) + ((0, n_pad - n),)
    return jnp.pad(a, pad, constant_values=value)


def _pack_param(p, B, F, n_pad, pad_value):
    row = jnp.broadcast_to(p.reshape(1, F).astype(jnp.float32), (B, F)).reshape(1, B * F)
    return _pad_lanes(row, n_pad, pad_value)


# BlockSpecs -- direct (B, T, F) path (batch dim squeezed out of the kernel view)
def _xspec_d(T, ft):
    return pl.BlockSpec((None, T, ft), lambda b, j: (b, 0, j))


def _statspec_d(ft):
    return pl.BlockSpec((None, 1, ft), lambda b, j: (b, 0, j))


def _paramspec_d(ft):
    return pl.BlockSpec((1, ft), lambda b, j: (0, j))


# BlockSpecs -- packed (T, B*F) path
def _xspec_p(T, ln):
    return pl.BlockSpec((T, ln), lambda j: (0, j))


def _rowspec_p(ln):
    return pl.BlockSpec((1, ln), lambda j: (0, j))


# ---------------------------------------------------------------------------
# Wrappers
# ---------------------------------------------------------------------------

@functools.partial(jax.jit, static_argnames=("eps", "affine"))
def revin_norm(x, weight, bias, *, eps, affine):
    B, T, F = x.shape
    cap, target = _hw_params()
    kern = functools.partial(_norm_kernel, eps=eps, affine=affine, inv_t=1.0 / T)
    w_row = weight.reshape(1, F).astype(jnp.float32)
    b_row = bias.reshape(1, F).astype(jnp.float32)

    if _use_direct(B, T, F, x.dtype.itemsize, target):
        ft = _pick_tile(F, T, x.dtype.itemsize, target, min_steps=2 if B == 1 else 1)
        xblk = T * ft * x.dtype.itemsize
        need = 2 * (2 * xblk + 4 * ft * 4) + 4 * T * ft * 4
        return pl.pallas_call(
            kern,
            out_shape=(
                jax.ShapeDtypeStruct((B, T, F), x.dtype),
                jax.ShapeDtypeStruct((B, 1, F), jnp.float32),
                jax.ShapeDtypeStruct((B, 1, F), jnp.float32),
            ),
            grid_spec=pltpu.PrefetchScalarGridSpec(
                num_scalar_prefetch=0,
                grid=(B, F // ft),
                in_specs=[_xspec_d(T, ft), _paramspec_d(ft), _paramspec_d(ft)],
                out_specs=[_xspec_d(T, ft), _statspec_d(ft), _statspec_d(ft)],
            ),
            compiler_params=pltpu.CompilerParams(
                dimension_semantics=("parallel", "parallel"),
                vmem_limit_bytes=_vmem_limit(need, cap),
            ),
        )(x, w_row, b_row)

    # --- packed fallback (small F) ---
    N = B * F
    n_pad = _round_up(N, _LANE)
    ln = _pick_tile(n_pad, T, 4, target, min_steps=2)
    xt = _pad_lanes(_pack(x), n_pad)
    wt = _pack_param(weight, B, F, n_pad, 1.0)
    bt = _pack_param(bias, B, F, n_pad, 0.0)
    xblk = T * ln * xt.dtype.itemsize
    need = 2 * (2 * xblk + 4 * ln * 4) + 4 * T * ln * 4
    y_p, mean_p, std_p = pl.pallas_call(
        kern,
        out_shape=(
            jax.ShapeDtypeStruct((T, n_pad), x.dtype),
            jax.ShapeDtypeStruct((1, n_pad), jnp.float32),
            jax.ShapeDtypeStruct((1, n_pad), jnp.float32),
        ),
        grid_spec=pltpu.PrefetchScalarGridSpec(
            num_scalar_prefetch=0,
            grid=(n_pad // ln,),
            in_specs=[_xspec_p(T, ln), _rowspec_p(ln), _rowspec_p(ln)],
            out_specs=[_xspec_p(T, ln), _rowspec_p(ln), _rowspec_p(ln)],
        ),
        compiler_params=pltpu.CompilerParams(
            dimension_semantics=("parallel",),
            vmem_limit_bytes=_vmem_limit(need, cap),
        ),
    )(xt, wt, bt)
    y = _unpack(y_p, B, T, F)
    mean = mean_p[:, :N].reshape(B, 1, F)
    std = std_p[:, :N].reshape(B, 1, F)
    return y, mean, std


@functools.partial(jax.jit, static_argnames=("eps", "affine"))
def revin_norm_masked(x, missing_mask, weight, bias, *, eps, affine):
    B, T, F = x.shape
    cap, target = _hw_params()
    kern = functools.partial(_norm_masked_kernel, eps=eps, affine=affine)
    w_row = weight.reshape(1, F).astype(jnp.float32)
    b_row = bias.reshape(1, F).astype(jnp.float32)

    if _use_direct(B, T, F, x.dtype.itemsize, target):
        ft = _pick_tile(F, T, x.dtype.itemsize, target, min_steps=2 if B == 1 else 1)
        xblk = T * ft * x.dtype.itemsize
        mblk = T * ft * missing_mask.dtype.itemsize
        need = 2 * (2 * xblk + mblk + 4 * ft * 4) + 5 * T * ft * 4
        return pl.pallas_call(
            kern,
            out_shape=(
                jax.ShapeDtypeStruct((B, T, F), x.dtype),
                jax.ShapeDtypeStruct((B, 1, F), jnp.float32),
                jax.ShapeDtypeStruct((B, 1, F), jnp.float32),
            ),
            grid_spec=pltpu.PrefetchScalarGridSpec(
                num_scalar_prefetch=0,
                grid=(B, F // ft),
                in_specs=[_xspec_d(T, ft), _xspec_d(T, ft),
                          _paramspec_d(ft), _paramspec_d(ft)],
                out_specs=[_xspec_d(T, ft), _statspec_d(ft), _statspec_d(ft)],
            ),
            compiler_params=pltpu.CompilerParams(
                dimension_semantics=("parallel", "parallel"),
                vmem_limit_bytes=_vmem_limit(need, cap),
            ),
        )(x, missing_mask, w_row, b_row)

    # --- packed fallback (small F); mask shipped as int8 since it is repacked anyway ---
    N = B * F
    n_pad = _round_up(N, _LANE)
    ln = _pick_tile(n_pad, T, 4, target, min_steps=2)
    xt = _pad_lanes(_pack(x), n_pad)
    mt = _pad_lanes(_pack((missing_mask != 0).astype(jnp.int8)), n_pad, 0)
    wt = _pack_param(weight, B, F, n_pad, 1.0)
    bt = _pack_param(bias, B, F, n_pad, 0.0)
    xblk = T * ln * xt.dtype.itemsize
    need = 2 * (2 * xblk + T * ln + 4 * ln * 4) + 5 * T * ln * 4
    y_p, mean_p, std_p = pl.pallas_call(
        kern,
        out_shape=(
            jax.ShapeDtypeStruct((T, n_pad), x.dtype),
            jax.ShapeDtypeStruct((1, n_pad), jnp.float32),
            jax.ShapeDtypeStruct((1, n_pad), jnp.float32),
        ),
        grid_spec=pltpu.PrefetchScalarGridSpec(
            num_scalar_prefetch=0,
            grid=(n_pad // ln,),
            in_specs=[_xspec_p(T, ln), _xspec_p(T, ln), _rowspec_p(ln), _rowspec_p(ln)],
            out_specs=[_xspec_p(T, ln), _rowspec_p(ln), _rowspec_p(ln)],
        ),
        compiler_params=pltpu.CompilerParams(
            dimension_semantics=("parallel",),
            vmem_limit_bytes=_vmem_limit(need, cap),
        ),
    )(xt, mt, wt, bt)
    y = _unpack(y_p, B, T, F)
    mean = mean_p[:, :N].reshape(B, 1, F)
    std = std_p[:, :N].reshape(B, 1, F)
    return y, mean, std


@functools.partial(jax.jit, static_argnames=("eps", "affine"))
def revin_denorm(x, mean, stdev, weight, bias, *, eps, affine):
    B, T, F = x.shape
    cap, target = _hw_params()
    kern = functools.partial(_denorm_kernel, eps=eps, affine=affine)
    w_row = weight.reshape(1, F).astype(jnp.float32)
    b_row = bias.reshape(1, F).astype(jnp.float32)

    if _use_direct(B, T, F, x.dtype.itemsize, target):
        ft = _pick_tile(F, T, x.dtype.itemsize, target, min_steps=2 if B == 1 else 1)
        xblk = T * ft * x.dtype.itemsize
        need = 2 * (2 * xblk + 4 * ft * 4) + 3 * T * ft * 4
        return pl.pallas_call(
            kern,
            out_shape=jax.ShapeDtypeStruct((B, T, F), x.dtype),
            grid_spec=pltpu.PrefetchScalarGridSpec(
                num_scalar_prefetch=0,
                grid=(B, F // ft),
                in_specs=[_xspec_d(T, ft), _statspec_d(ft), _statspec_d(ft),
                          _paramspec_d(ft), _paramspec_d(ft)],
                out_specs=_xspec_d(T, ft),
            ),
            compiler_params=pltpu.CompilerParams(
                dimension_semantics=("parallel", "parallel"),
                vmem_limit_bytes=_vmem_limit(need, cap),
            ),
        )(x, mean.astype(jnp.float32), stdev.astype(jnp.float32), w_row, b_row)

    # --- packed fallback (small F) ---
    N = B * F
    n_pad = _round_up(N, _LANE)
    ln = _pick_tile(n_pad, T, 4, target, min_steps=2)
    xt = _pad_lanes(_pack(x), n_pad)
    mean_t = _pad_lanes(mean.astype(jnp.float32).reshape(1, N), n_pad, 0.0)
    std_t = _pad_lanes(stdev.astype(jnp.float32).reshape(1, N), n_pad, 1.0)
    wt = _pack_param(weight, B, F, n_pad, 1.0)
    bt = _pack_param(bias, B, F, n_pad, 0.0)
    xblk = T * ln * xt.dtype.itemsize
    need = 2 * (2 * xblk + 4 * ln * 4) + 3 * T * ln * 4
    y_p = pl.pallas_call(
        kern,
        out_shape=jax.ShapeDtypeStruct((T, n_pad), x.dtype),
        grid_spec=pltpu.PrefetchScalarGridSpec(
            num_scalar_prefetch=0,
            grid=(n_pad // ln,),
            in_specs=[_xspec_p(T, ln), _rowspec_p(ln), _rowspec_p(ln),
                      _rowspec_p(ln), _rowspec_p(ln)],
            out_specs=_xspec_p(T, ln),
        ),
        compiler_params=pltpu.CompilerParams(
            dimension_semantics=("parallel",),
            vmem_limit_bytes=_vmem_limit(need, cap),
        ),
    )(xt, mean_t, std_t, wt, bt)
    return _unpack(y_p, B, T, F)


# ---------------------------------------------------------------------------
# Module-like wrapper mirroring the PyTorch RevIN semantics
# ---------------------------------------------------------------------------

class RevIN:
    def __init__(self, n_features: int, eps: float = 1e-9, affine: bool = True):
        self.n_features = n_features
        self.eps = eps
        self.affine = affine
        # deterministic init matching nn.Parameter(torch.ones/zeros(n_features))
        self.affine_weight = jnp.ones((n_features,), jnp.float32)
        self.affine_bias = jnp.zeros((n_features,), jnp.float32)
        self.mean = None
        self.stdev = None

    def __call__(self, x, missing_mask=None, mode: str = "norm"):
        if mode == "norm":
            if missing_mask is None:
                y, mean, stdev = revin_norm(
                    x, self.affine_weight, self.affine_bias,
                    eps=self.eps, affine=self.affine)
            else:
                y, mean, stdev = revin_norm_masked(
                    x, missing_mask, self.affine_weight, self.affine_bias,
                    eps=self.eps, affine=self.affine)
            self.mean, self.stdev = mean, stdev
            return y
        elif mode == "denorm":
            return revin_denorm(
                x, self.mean, self.stdev, self.affine_weight, self.affine_bias,
                eps=self.eps, affine=self.affine)
        else:
            raise NotImplementedError


# ---------------------------------------------------------------------------
# Pure-JAX references for correctness checking
# ---------------------------------------------------------------------------

def _ref_norm(x, w, b, eps):
    mean = jnp.mean(x, axis=1, keepdims=True)
    var = jnp.mean((x - mean) ** 2, axis=1, keepdims=True)
    std = jnp.sqrt(var + eps)
    return ((x - mean) / std) * w + b, mean, std


def _ref_norm_masked(x, m, w, b, eps):
    missing_sum = jnp.sum((m == 1).astype(jnp.float32), axis=1, keepdims=True) + eps
    mean = jnp.sum(x, axis=1, keepdims=True) / missing_sum
    x_enc = jnp.where(m == 0, 0.0, x)
    variance = jnp.sum(x_enc * x_enc, axis=1, keepdims=True) + eps
    std = jnp.sqrt(variance / missing_sum)
    return ((x - mean) / std) * w + b, mean, std


if __name__ == "__main__":
    key = jax.random.PRNGKey(0)
    kx, km, k2, km2 = jax.random.split(key, 4)

    # ---- small F (packed lane-dense fallback path) ----
    B, T, F = 2, 8, 4
    x = jax.random.normal(kx, (B, T, F), jnp.float32) * 2.0 + 0.5
    mask = (jax.random.uniform(km, (B, T, F)) > 0.3).astype(jnp.float32)

    model = RevIN(n_features=F, eps=1e-9, affine=True)
    w_row = model.affine_weight.reshape(1, F)
    b_row = model.affine_bias.reshape(1, F)

    y = model(x, mode="norm")
    jax.block_until_ready(y)
    y_ref, mean_ref, std_ref = _ref_norm(x, w_row, b_row, model.eps)
    assert jnp.allclose(y, y_ref, atol=2e-5, rtol=2e-5)
    assert jnp.allclose(model.mean, mean_ref, atol=1e-5)
    assert jnp.allclose(model.stdev, std_ref, atol=1e-5)

    x_rec = model(y, mode="denorm")
    jax.block_until_ready(x_rec)
    assert jnp.allclose(x_rec, x, atol=1e-4, rtol=1e-4)

    y_m = model(x, missing_mask=mask, mode="norm")
    jax.block_until_ready(y_m)
    ym_ref, _, _ = _ref_norm_masked(x, mask, w_row, b_row, model.eps)
    assert jnp.allclose(y_m, ym_ref, atol=2e-5, rtol=2e-5)

    # ---- lane-friendly F (direct zero-repack path) ----
    B2, T2, F2 = 2, 16, 128
    x2 = jax.random.normal(k2, (B2, T2, F2), jnp.float32) * 1.5 - 0.25
    mask2 = (jax.random.uniform(km2, (B2, T2, F2)) > 0.4).astype(jnp.float32)

    model2 = RevIN(n_features=F2, eps=1e-9, affine=True)
    w2 = model2.affine_weight.reshape(1, F2)
    b2 = model2.affine_bias.reshape(1, F2)

    y2 = model2(x2, mode="norm")
    jax.block_until_ready(y2)
    y2_ref, mean2_ref, std2_ref = _ref_norm(x2, w2, b2, model2.eps)
    assert jnp.allclose(y2, y2_ref, atol=2e-5, rtol=2e-5)
    assert jnp.allclose(model2.mean, mean2_ref, atol=1e-5)
    assert jnp.allclose(model2.stdev, std2_ref, atol=1e-5)

    x2_rec = model2(y2, mode="denorm")
    jax.block_until_ready(x2_rec)
    assert jnp.allclose(x2_rec, x2, atol=1e-4, rtol=1e-4)

    y2_m = model2(x2, missing_mask=mask2, mode="norm")
    jax.block_until_ready(y2_m)
    y2m_ref, _, _ = _ref_norm_masked(x2, mask2, w2, b2, model2.eps)
    assert jnp.allclose(y2_m, y2m_ref, atol=2e-5, rtol=2e-5)

    print("KERNEL_OK")
</pallas_src>

<mosaic_0001>
module attributes {stable_mosaic.version = 11 : i64} {
  func.func @_norm_kernel(%arg0: i32, %arg1: memref<8x128xf32, #tpu.memory_space<vmem>>, %arg2: memref<1x128xf32, #tpu.memory_space<vmem>>, %arg3: memref<1x128xf32, #tpu.memory_space<vmem>>, %arg4: memref<8x128xf32, #tpu.memory_space<vmem>>, %arg5: memref<1x128xf32, #tpu.memory_space<vmem>>, %arg6: memref<1x128xf32, #tpu.memory_space<vmem>>) attributes {dimension_semantics = [#tpu.dimension_semantics<parallel>], iteration_bounds = array<i64: 1>, scalar_prefetch = 0 : i64, scratch_operands = 0 : i64, tpu.core_type = #tpu.core_type<tc>, window_params = [{transform_indices = @transform_0, window_bounds = array<i64: 8, 128>}, {transform_indices = @transform_1, window_bounds = array<i64: 1, 128>}, {transform_indices = @transform_2, window_bounds = array<i64: 1, 128>}, {transform_indices = @transform_3, window_bounds = array<i64: 8, 128>}, {transform_indices = @transform_4, window_bounds = array<i64: 1, 128>}, {transform_indices = @transform_5, window_bounds = array<i64: 1, 128>}]} {
    %c0 = arith.constant 0 : index
    %c0_0 = arith.constant 0 : index
    %0 = vector.load %arg1[%c0, %c0_0] : memref<8x128xf32, #tpu.memory_space<vmem>>, vector<8x128xf32>
    %cst = arith.constant dense<0.000000e+00> : vector<128xf32>
    %1 = vector.multi_reduction <add>, %0, %cst [0] : vector<8x128xf32> to vector<128xf32>
    %2 = vector.shape_cast %1 : vector<128xf32> to vector<1x128xf32>
    %3 = arith.mulf %0, %0 : vector<8x128xf32>
    %cst_1 = arith.constant dense<0.000000e+00> : vector<128xf32>
    %4 = vector.multi_reduction <add>, %3, %cst_1 [0] : vector<8x128xf32> to vector<128xf32>
    %5 = vector.shape_cast %4 : vector<128xf32> to vector<1x128xf32>
    %cst_2 = arith.constant 1.250000e-01 : f32
    %6 = vector.broadcast %cst_2 : f32 to vector<1x128xf32>
    %7 = arith.mulf %2, %6 : vector<1x128xf32>
    %cst_3 = arith.constant 1.250000e-01 : f32
    %8 = vector.broadcast %cst_3 : f32 to vector<1x128xf32>
    %9 = arith.mulf %5, %8 : vector<1x128xf32>
    %10 = arith.mulf %7, %7 : vector<1x128xf32>
    %11 = arith.subf %9, %10 : vector<1x128xf32>
    %cst_4 = arith.constant 0.000000e+00 : f32
    %12 = vector.broadcast %cst_4 : f32 to vector<1x128xf32>
    %13 = arith.maximumf %11, %12 : vector<1x128xf32>
    %cst_5 = arith.constant 9.99999971E-10 : f32
    %14 = vector.broadcast %cst_5 : f32 to vector<1x128xf32>
    %15 = arith.addf %13, %14 : vector<1x128xf32>
    %16 = math.sqrt %15 : vector<1x128xf32>
    %cst_6 = arith.constant 9.99999971E-10 : f32
    %17 = vector.broadcast %cst_6 : f32 to vector<1x128xf32>
    %18 = arith.addf %13, %17 : vector<1x128xf32>
    %19 = math.rsqrt %18 : vector<1x128xf32>
    %c0_7 = arith.constant 0 : index
    %c0_8 = arith.constant 0 : index
    %20 = vector.load %arg2[%c0_7, %c0_8] : memref<1x128xf32, #tpu.memory_space<vmem>>, vector<1x128xf32>
    %21 = arith.mulf %19, %20 : vector<1x128xf32>
    %c0_9 = arith.constant 0 : index
    %c0_10 = arith.constant 0 : index
    %22 = vector.load %arg3[%c0_9, %c0_10] : memref<1x128xf32, #tpu.memory_space<vmem>>, vector<1x128xf32>
    %23 = arith.mulf %7, %21 : vector<1x128xf32>
    %24 = arith.subf %22, %23 : vector<1x128xf32>
    %25 = vector.broadcast %21 : vector<1x128xf32> to vector<8x128xf32>
    %26 = arith.mulf %0, %25 : vector<8x128xf32>
    %27 = vector.broadcast %24 : vector<1x128xf32> to vector<8x128xf32>
    %28 = arith.addf %26, %27 : vector<8x128xf32>
    %c0_11 = arith.constant 0 : index
    %c0_12 = arith.constant 0 : index
    %29 = vector.load %arg4[%c0_11, %c0_12] : memref<8x128xf32, #tpu.memory_space<vmem>>, vector<8x128xf32>
    tpu.vector_store %arg4[%c0_11, %c0_12], %28 {strides = array<i32>} : memref<8x128xf32, #tpu.memory_space<vmem>>, vector<8x128xf32>,
    %c0_13 = arith.constant 0 : index
    %c0_14 = arith.constant 0 : index
    %30 = vector.load %arg5[%c0_13, %c0_14] : memref<1x128xf32, #tpu.memory_space<vmem>>, vector<1x128xf32>
    tpu.vector_store %arg5[%c0_13, %c0_14], %7 {strides = array<i32>} : memref<1x128xf32, #tpu.memory_space<vmem>>, vector<1x128xf32>,
    %c0_15 = arith.constant 0 : index
    %c0_16 = arith.constant 0 : index
    %31 = vector.load %arg6[%c0_15, %c0_16] : memref<1x128xf32, #tpu.memory_space<vmem>>, vector<1x128xf32>
    tpu.vector_store %arg6[%c0_15, %c0_16], %16 {strides = array<i32>} : memref<1x128xf32, #tpu.memory_space<vmem>>, vector<1x128xf32>,
    return
  }
  func.func @transform_0(%arg0: i32) -> (i32, i32) {
    %c0_i32 = arith.constant 0 : i32
    %c0_i32_0 = arith.constant 0 : i32
    return %c0_i32, %arg0 : i32, i32
  }
  func.func @transform_1(%arg0: i32) -> (i32, i32) {
    %c0_i32 = arith.constant 0 : i32
    %c0_i32_0 = arith.constant 0 : i32
    return %c0_i32, %arg0 : i32, i32
  }
  func.func @transform_2(%arg0: i32) -> (i32, i32) {
    %c0_i32 = arith.constant 0 : i32
    %c0_i32_0 = arith.constant 0 : i32
    return %c0_i32, %arg0 : i32, i32
  }
  func.func @transform_3(%arg0: i32) -> (i32, i32) {
    %c0_i32 = arith.constant 0 : i32
    %c0_i32_0 = arith.constant 0 : i32
    return %c0_i32, %arg0 : i32, i32
  }
  func.func @transform_4(%arg0: i32) -> (i32, i32) {
    %c0_i32 = arith.constant 0 : i32
    %c0_i32_0 = arith.constant 0 : i32
    return %c0_i32, %arg0 : i32, i32
  }
  func.func @transform_5(%arg0: i32) -> (i32, i32) {
    %c0_i32 = arith.constant 0 : i32
    %c0_i32_0 = arith.constant 0 : i32
    return %c0_i32, %arg0 : i32, i32
  }
}

</mosaic_0001>

<llo_original>
// kernel: revin_norm.1
$region0: #{revin_norm.1}
  #allocation0 [shape = 'u32[]', space=smem, size = 0x4, offset = 0x4, fixed_abs, tag = 'smem constant byte address 0x4 - core index']
  #allocation1 [shape = 'u32[144,128]{1,0:T(1,128)}', space=vmem, size = 0x12000, scoped, tag = 'internal scratch']
  %s0 = inlined_call_operand.vmem [shape: f32[8,128], index: 0, kind: input, shape index: {}]
  %s1 = inlined_call_operand.vmem [shape: f32[1,128], index: 1, kind: input, shape index: {}]
  %s2 = inlined_call_operand.vmem [shape: f32[1,128], index: 2, kind: input, shape index: {}]
  %s3 = inlined_call_operand.vmem [shape: f32[8,128], index: 3, kind: output, shape index: {0}]
  %s4 = inlined_call_operand.vmem [shape: f32[1,128], index: 4, kind: output, shape index: {1}]
  %s5 = inlined_call_operand.vmem [shape: f32[1,128], index: 5, kind: output, shape index: {2}]
  %6 = xla_tuple %s3, %s4, %s5
  %s7 = sld [smem:[#allocation0]]
  $region38: #{revin_norm.1} parent=0
    _
  %s9 = ssub.s32 1, %s7
  %s10 = scalar_select 0, %s9, %s7
  // Predicated region
  $region2: #{revin_norm.1} parent=0 // pred_check
    _
  $region3: #{revin_norm.1} parent=0 // pred_check_branch
    %12 = sbr.rel (0) target = $region5
  $region4: #{revin_norm.1} parent=0 // pred_region
    _
  $region5: #{revin_norm.1} parent=0 // pred_fallthru
    _
  // Predicated region
  $region6: #{revin_norm.1} parent=0 // pred_check
    _
  $region7: #{revin_norm.1} parent=0 // pred_check_branch
    %14 = sbr.rel (0) target = $region9
  $region8: #{revin_norm.1} parent=0 // pred_region
    _
  $region9: #{revin_norm.1} parent=0 // pred_fallthru
    _
  // Predicated region
  $region10: #{revin_norm.1} parent=0 // pred_check
    _
  $region11: #{revin_norm.1} parent=0 // pred_check_branch
    %16 = sbr.rel (0) target = $region13
  $region12: #{revin_norm.1} parent=0 // pred_region
    _
  $region13: #{revin_norm.1} parent=0 // pred_fallthru
    _
  %v17 = vld [vmem:[%s0] sm:$0xff]
  %v18 = vrot.slane %v17, 4
  %v19 = vadd.f32 %v17, %v18
  %v20 = vrot.slane %v19, 2
  %v21 = vadd.f32 %v19, %v20
  %v22 = vrot.slane %v21, 1
  %v23 = vadd.f32 %v21, %v22
  %v24 = vmul.f32 %v17, %v17
  %v25 = vrot.slane %v24, 4
  %v26 = vadd.f32 %v24, %v25
  %v27 = vrot.slane %v26, 2
  %v28 = vadd.f32 %v26, %v27
  %v29 = vrot.slane %v28, 1
  %v30 = vadd.f32 %v28, %v29
  %v31 = vmul.f32 %v23, 0.125
  %v32 = vmul.f32 %v30, 0.125
  %v33 = vmul.f32 %v31, %v31
  %v34 = vsub.f32 %v32, %v33
  %v35 = vmax.f32 %v34, 0.0
  %v36 = vadd.f32 %v35, 1e-09
  %v37 = vrsqrt.pop %v36
  %v38 = vmul.f32 %v36, %v37
  %vm39 = vcmp.eq.f32.partialorder %v36, inf
  %v40 = vsel %vm39, %v36, %v38
  %vm41 = vcmp.eq.f32.partialorder %v36, 0.0
  %v42 = vand.u32 %v36, 2147483648
  %v43 = vsel %vm41, %v42, %v40
  %v44 = vrsqrt.pop %v36
  %v45 = vld [vmem:[%s1] sm:$0x1]
  %v46 = vmul.f32 %v44, %v45
  %v47 = vld [vmem:[%s2] sm:$0x1]
  %v48 = vmul.f32 %v31, %v46
  %v49 = vsub.f32 %v47, %v48
  %v50 = vlaneseq
  %v51 = vshrl.u32 %v50, 7
  %v52 = vsub.s32 0, %v51
  %v53 = vrot.slane %v46, %v52
  %v54 = vmul.f32 %v17, %v53
  %v56 = vlaneseq
  %v57 = vshrl.u32 %v56, 7
  %v58 = vsub.s32 0, %v57
  %v59 = vrot.slane %v49, %v58
  %v61 = vadd.f32 %v54, %v59
  %62 = vst [vmem:[%s3] sm:$0xff] %v61
  %63 = vst [vmem:[%s4] sm:$0x1] %v31
  %64 = vst [vmem:[%s5] sm:$0x1] %v43
  // Predicated region
  $region14: #{revin_norm.1} parent=0 // pred_check
    _
  $region15: #{revin_norm.1} parent=0 // pred_check_branch
    %66 = sbr.rel (0) target = $region17
  $region16: #{revin_norm.1} parent=0 // pred_region
    _
  $region17: #{revin_norm.1} parent=0 // pred_fallthru
    _
  // Predicated region
  $region18: #{revin_norm.1} parent=0 // pred_check
    _
  $region19: #{revin_norm.1} parent=0 // pred_check_branch
    %68 = sbr.rel (0) target = $region21
  $region20: #{revin_norm.1} parent=0 // pred_region
    _
  $region21: #{revin_norm.1} parent=0 // pred_fallthru
    _
  // Predicated region
  $region22: #{revin_norm.1} parent=0 // pred_check
    _
  $region23: #{revin_norm.1} parent=0 // pred_check_branch
    %70 = sbr.rel (0) target = $region25
  $region24: #{revin_norm.1} parent=0 // pred_region
    _
  $region25: #{revin_norm.1} parent=0 // pred_fallthru
    _
  // Predicated region
  $region26: #{revin_norm.1} parent=0 // pred_check
    _
  $region27: #{revin_norm.1} parent=0 // pred_check_branch
    %72 = sbr.rel (0) target = $region29
  $region28: #{revin_norm.1} parent=0 // pred_region
    _
  $region29: #{revin_norm.1} parent=0 // pred_fallthru
    _
  // Predicated region
  $region30: #{revin_norm.1} parent=0 // pred_check
    _
  $region31: #{revin_norm.1} parent=0 // pred_check_branch
    %74 = sbr.rel (0) target = $region33
  $region32: #{revin_norm.1} parent=0 // pred_region
    _
  $region33: #{revin_norm.1} parent=0 // pred_fallthru
    _
  // Predicated region
  $region34: #{revin_norm.1} parent=0 // pred_check
    _
  $region35: #{revin_norm.1} parent=0 // pred_check_branch
    %76 = sbr.rel (0) target = $region37
  $region36: #{revin_norm.1} parent=0 // pred_region
    _
  $region37: #{revin_norm.1} parent=0 // pred_fallthru
    _

</llo_original>
